<compile_context>
chip_gen: v7x
topology: tpu7x:2x2x1
jax: 0.10.0
libtpu: 0.0.40
codegen_flags: <defaults>
</compile_context>

<pallas_src>
import jax
import jax.numpy as jnp
from jax.experimental import pallas as pl
from jax.experimental.pallas import tpu as pltpu

# ---- model hyperparameters (small, consistent with the module) -------------
B, L = 2, 8           # batch, sequence length
V, D = 50, 32         # vocab size, embed dim
H = 32                # LSTM hidden size
C = 4                 # class_num
G = 4 * H             # gate width (i, f, g, o), lane-dense (=128)


def _sigmoid(x):
    # Explicit logistic so the Pallas kernel and the JAX reference use the
    # exact same formula (exp lowers to the EUP slot).
    return 1.0 / (1.0 + jnp.exp(-x))


def lstm_text_kernel(x_ref, wih_ref, whh_ref, b_ref, fcw_ref, fcb_ref, out_ref):
    """Single-invocation kernel: LSTM recurrence -> max-over-time -> fc."""
    # One fused MXU matmul for every timestep's input projection:
    #   (L*B, D) @ (D, 4H) + (bias_ih + bias_hh); rows ordered t-major.
    xproj = jnp.dot(x_ref[...], wih_ref[...],
                    preferred_element_type=jnp.float32) + b_ref[...]   # (L*B, 4H)

    whh = whh_ref[...]                                                 # (H, 4H)

    def cell(gates, c_prev):
        # PyTorch gate order along 4H: input, forget, cell(g), output.
        i = _sigmoid(gates[:, 0 * H:1 * H])
        g = jnp.tanh(gates[:, 2 * H:3 * H])
        o = _sigmoid(gates[:, 3 * H:4 * H])
        ig = i * g
        if c_prev is None:                     # t == 0: f * c_prev == 0
            c = ig
        else:
            f = _sigmoid(gates[:, 1 * H:2 * H])
            c = f * c_prev + ig
        h = o * jnp.tanh(c)
        return h, c

    # t = 0: h0 = c0 = 0, so the hidden matmul vanishes.
    h, c = cell(xproj[0:B, :], None)
    h_max = h                                  # seed running max with real data

    # Remaining timesteps: sequential recurrence (one small MXU matmul each).
    for t in range(1, L):                      # static unroll, L is tiny
        gates = xproj[t * B:(t + 1) * B, :] + jnp.dot(
            h, whh, preferred_element_type=jnp.float32)                # (B, 4H)
        h, c = cell(gates, c)
        h_max = jnp.maximum(h_max, h)          # F.max_pool1d over time, online

    # fc: single matmul, logits seeded directly with the bias broadcast.
    out_ref[...] = jnp.dot(h_max, fcw_ref[...],
                           preferred_element_type=jnp.float32) + fcb_ref[...]


def my_lstm_text_forward(words, params):
    # Embedding lookup (gather) is glue, done in plain JAX at this size.
    # TODO(synk): at production B*L, fold the gather into the kernel via
    # PrefetchScalarGridSpec-prefetched `words` + a row-gather BlockSpec on
    # `embed`, and shard a batch grid with a "parallel" axis.
    emb = params["embed"][words.T].astype(jnp.float32)   # (L, B, D) time-major
    x = emb.reshape(L * B, D)                            # row = t*B + b

    ins = (x, params["wih_t"], params["whh_t"], params["b"],
           params["fcw_t"], params["fcb"])

    return pl.pallas_call(
        lstm_text_kernel,
        out_shape=jax.ShapeDtypeStruct((words.shape[0], C), jnp.float32),
        in_specs=[pl.BlockSpec(memory_space=pltpu.MemorySpace.VMEM)] * len(ins),
        out_specs=pl.BlockSpec(memory_space=pltpu.MemorySpace.VMEM),
    )(*ins)


def reference_forward(words, params):
    """Pure-JAX reference of the same math (eval mode)."""
    emb = params["embed"][words.T].astype(jnp.float32)   # (L, B, D)
    wih_t, whh_t = params["wih_t"], params["whh_t"]
    b = params["b"][0]                                   # (4H,)

    def step(carry, x_t):
        h, c = carry
        gates = x_t @ wih_t + h @ whh_t + b
        i = _sigmoid(gates[:, 0 * H:1 * H])
        f = _sigmoid(gates[:, 1 * H:2 * H])
        g = jnp.tanh(gates[:, 2 * H:3 * H])
        o = _sigmoid(gates[:, 3 * H:4 * H])
        c = f * c + i * g
        h = o * jnp.tanh(c)
        return (h, c), h

    init = (jnp.zeros((words.shape[0], H), jnp.float32),
            jnp.zeros((words.shape[0], H), jnp.float32))
    _, hs = jax.lax.scan(step, init, emb)                # (L, B, H)
    pooled = jnp.max(hs, axis=0)                         # max_pool1d over time
    return pooled @ params["fcw_t"] + params["fcb"]


def init_params(key):
    ks = jax.random.split(key, 6)
    embed = jax.random.normal(ks[0], (V, D), jnp.float32) * 0.1
    # LSTM weights stored transposed from PyTorch:
    #   weight_ih_l0 (4H, D) -> wih_t (D, 4H); weight_hh_l0 (4H, H) -> whh_t (H, 4H)
    # with PyTorch gate order (i, f, g, o) along the 4H axis.
    wih_t = jax.random.normal(ks[1], (D, G), jnp.float32) * 0.1
    whh_t = jax.random.normal(ks[2], (H, G), jnp.float32) * 0.1
    # b == bias_ih_l0 + bias_hh_l0, pre-summed once on the host.
    b = jax.random.normal(ks[3], (1, G), jnp.float32) * 0.1
    # fc: PyTorch weight (C, H) -> stored transposed (H, C); bias as (1, C).
    fcw_t = jax.random.normal(ks[4], (H, C), jnp.float32) * 0.1
    fcb = jax.random.normal(ks[5], (1, C), jnp.float32) * 0.1
    # TODO(synk): nn.LSTM(dropout=...) with num_layers=1 applies no dropout
    # (and eval mode is identity), so no dropout is modeled here.
    return dict(embed=embed, wih_t=wih_t, whh_t=whh_t, b=b, fcw_t=fcw_t, fcb=fcb)


if __name__ == "__main__":
    key = jax.random.PRNGKey(0)
    k_param, k_words = jax.random.split(key)
    params = init_params(k_param)
    words = jax.random.randint(k_words, (B, L), 0, V, dtype=jnp.int32)

    logits = jax.block_until_ready(my_lstm_text_forward(words, params))
    ref = jax.block_until_ready(reference_forward(words, params))

    assert logits.shape == (B, C)
    assert jnp.allclose(logits, ref, atol=1e-4, rtol=1e-4), "mismatch vs reference"

    print("KERNEL_OK")
</pallas_src>

<mosaic_0001>
module attributes {stable_mosaic.version = 11 : i64} {
  func.func @lstm_text_kernel(%arg0: memref<16x32xf32, #tpu.memory_space<vmem>>, %arg1: memref<32x128xf32, #tpu.memory_space<vmem>>, %arg2: memref<32x128xf32, #tpu.memory_space<vmem>>, %arg3: memref<1x128xf32, #tpu.memory_space<vmem>>, %arg4: memref<32x4xf32, #tpu.memory_space<vmem>>, %arg5: memref<1x4xf32, #tpu.memory_space<vmem>>, %arg6: memref<2x4xf32, #tpu.memory_space<vmem>>) attributes {dimension_semantics = [], scalar_prefetch = 0 : i64, scratch_operands = 0 : i64, tpu.core_type = #tpu.core_type<tc>} {
    %c0 = arith.constant 0 : index
    %c0_0 = arith.constant 0 : index
    %0 = vector.load %arg0[%c0, %c0_0] : memref<16x32xf32, #tpu.memory_space<vmem>>, vector<16x32xf32>
    %c0_1 = arith.constant 0 : index
    %c0_2 = arith.constant 0 : index
    %1 = vector.load %arg1[%c0_1, %c0_2] : memref<32x128xf32, #tpu.memory_space<vmem>>, vector<32x128xf32>
    %cst = arith.constant dense<0.000000e+00> : vector<16x128xf32>
    %2 = tpu.matmul %0, %1, %cst {dimension_numbers = #tpu.dot_dimension_numbers<[1], [0], [0], [1], [0, 0, 1, 1], [], []>} : vector<16x32xf32>, vector<32x128xf32>, vector<16x128xf32> -> vector<16x128xf32>
    %c0_3 = arith.constant 0 : index
    %c0_4 = arith.constant 0 : index
    %3 = vector.load %arg3[%c0_3, %c0_4] : memref<1x128xf32, #tpu.memory_space<vmem>>, vector<1x128xf32>
    %4 = vector.broadcast %3 : vector<1x128xf32> to vector<16x128xf32>
    %5 = arith.addf %2, %4 : vector<16x128xf32>
    %c0_5 = arith.constant 0 : index
    %c0_6 = arith.constant 0 : index
    %6 = vector.load %arg2[%c0_5, %c0_6] : memref<32x128xf32, #tpu.memory_space<vmem>>, vector<32x128xf32>
    %7 = vector.extract_strided_slice %5 {offsets = [0, 0], sizes = [2, 128], strides = [1, 1]} : vector<16x128xf32> to vector<2x128xf32>
    %8 = vector.extract_strided_slice %7 {offsets = [0, 0], sizes = [2, 32], strides = [1, 1]} : vector<2x128xf32> to vector<2x32xf32>
    %cst_7 = arith.constant 0.000000e+00 : f32
    %9 = vector.broadcast %cst_7 : f32 to vector<2x32xf32>
    %10 = arith.subf %9, %8 : vector<2x32xf32>
    %11 = math.exp %10 : vector<2x32xf32>
    %cst_8 = arith.constant 1.000000e+00 : f32
    %12 = vector.broadcast %cst_8 : f32 to vector<2x32xf32>
    %13 = arith.addf %12, %11 : vector<2x32xf32>
    %cst_9 = arith.constant 1.000000e+00 : f32
    %14 = vector.broadcast %cst_9 : f32 to vector<2x32xf32>
    %15 = arith.divf %14, %13 : vector<2x32xf32>
    %16 = vector.extract_strided_slice %7 {offsets = [0, 64], sizes = [2, 32], strides = [1, 1]} : vector<2x128xf32> to vector<2x32xf32>
    %17 = math.tanh %16 : vector<2x32xf32>
    %18 = vector.extract_strided_slice %7 {offsets = [0, 96], sizes = [2, 32], strides = [1, 1]} : vector<2x128xf32> to vector<2x32xf32>
    %cst_10 = arith.constant 0.000000e+00 : f32
    %19 = vector.broadcast %cst_10 : f32 to vector<2x32xf32>
    %20 = arith.subf %19, %18 : vector<2x32xf32>
    %21 = math.exp %20 : vector<2x32xf32>
    %cst_11 = arith.constant 1.000000e+00 : f32
    %22 = vector.broadcast %cst_11 : f32 to vector<2x32xf32>
    %23 = arith.addf %22, %21 : vector<2x32xf32>
    %cst_12 = arith.constant 1.000000e+00 : f32
    %24 = vector.broadcast %cst_12 : f32 to vector<2x32xf32>
    %25 = arith.divf %24, %23 : vector<2x32xf32>
    %26 = arith.mulf %15, %17 : vector<2x32xf32>
    %27 = math.tanh %26 : vector<2x32xf32>
    %28 = arith.mulf %25, %27 : vector<2x32xf32>
    %29 = vector.extract_strided_slice %5 {offsets = [2, 0], sizes = [2, 128], strides = [1, 1]} : vector<16x128xf32> to vector<2x128xf32>
    %cst_13 = arith.constant dense<0.000000e+00> : vector<2x128xf32>
    %30 = tpu.matmul %28, %6, %cst_13 {dimension_numbers = #tpu.dot_dimension_numbers<[1], [0], [0], [1], [0, 0, 1, 1], [], []>} : vector<2x32xf32>, vector<32x128xf32>, vector<2x128xf32> -> vector<2x128xf32>
    %31 = arith.addf %29, %30 : vector<2x128xf32>
    %32 = vector.extract_strided_slice %31 {offsets = [0, 0], sizes = [2, 32], strides = [1, 1]} : vector<2x128xf32> to vector<2x32xf32>
    %cst_14 = arith.constant 0.000000e+00 : f32
    %33 = vector.broadcast %cst_14 : f32 to vector<2x32xf32>
    %34 = arith.subf %33, %32 : vector<2x32xf32>
    %35 = math.exp %34 : vector<2x32xf32>
    %cst_15 = arith.constant 1.000000e+00 : f32
    %36 = vector.broadcast %cst_15 : f32 to vector<2x32xf32>
    %37 = arith.addf %36, %35 : vector<2x32xf32>
    %cst_16 = arith.constant 1.000000e+00 : f32
    %38 = vector.broadcast %cst_16 : f32 to vector<2x32xf32>
    %39 = arith.divf %38, %37 : vector<2x32xf32>
    %40 = vector.extract_strided_slice %31 {offsets = [0, 64], sizes = [2, 32], strides = [1, 1]} : vector<2x128xf32> to vector<2x32xf32>
    %41 = math.tanh %40 : vector<2x32xf32>
    %42 = vector.extract_strided_slice %31 {offsets = [0, 96], sizes = [2, 32], strides = [1, 1]} : vector<2x128xf32> to vector<2x32xf32>
    %cst_17 = arith.constant 0.000000e+00 : f32
    %43 = vector.broadcast %cst_17 : f32 to vector<2x32xf32>
    %44 = arith.subf %43, %42 : vector<2x32xf32>
    %45 = math.exp %44 : vector<2x32xf32>
    %cst_18 = arith.constant 1.000000e+00 : f32
    %46 = vector.broadcast %cst_18 : f32 to vector<2x32xf32>
    %47 = arith.addf %46, %45 : vector<2x32xf32>
    %cst_19 = arith.constant 1.000000e+00 : f32
    %48 = vector.broadcast %cst_19 : f32 to vector<2x32xf32>
    %49 = arith.divf %48, %47 : vector<2x32xf32>
    %50 = arith.mulf %39, %41 : vector<2x32xf32>
    %51 = vector.extract_strided_slice %31 {offsets = [0, 32], sizes = [2, 32], strides = [1, 1]} : vector<2x128xf32> to vector<2x32xf32>
    %cst_20 = arith.constant 0.000000e+00 : f32
    %52 = vector.broadcast %cst_20 : f32 to vector<2x32xf32>
    %53 = arith.subf %52, %51 : vector<2x32xf32>
    %54 = math.exp %53 : vector<2x32xf32>
    %cst_21 = arith.constant 1.000000e+00 : f32
    %55 = vector.broadcast %cst_21 : f32 to vector<2x32xf32>
    %56 = arith.addf %55, %54 : vector<2x32xf32>
    %cst_22 = arith.constant 1.000000e+00 : f32
    %57 = vector.broadcast %cst_22 : f32 to vector<2x32xf32>
    %58 = arith.divf %57, %56 : vector<2x32xf32>
    %59 = arith.mulf %58, %26 : vector<2x32xf32>
    %60 = arith.addf %59, %50 : vector<2x32xf32>
    %61 = math.tanh %60 : vector<2x32xf32>
    %62 = arith.mulf %49, %61 : vector<2x32xf32>
    %63 = arith.maximumf %28, %62 : vector<2x32xf32>
    %64 = vector.extract_strided_slice %5 {offsets = [4, 0], sizes = [2, 128], strides = [1, 1]} : vector<16x128xf32> to vector<2x128xf32>
    %cst_23 = arith.constant dense<0.000000e+00> : vector<2x128xf32>
    %65 = tpu.matmul %62, %6, %cst_23 {dimension_numbers = #tpu.dot_dimension_numbers<[1], [0], [0], [1], [0, 0, 1, 1], [], []>} : vector<2x32xf32>, vector<32x128xf32>, vector<2x128xf32> -> vector<2x128xf32>
    %66 = arith.addf %64, %65 : vector<2x128xf32>
    %67 = vector.extract_strided_slice %66 {offsets = [0, 0], sizes = [2, 32], strides = [1, 1]} : vector<2x128xf32> to vector<2x32xf32>
    %cst_24 = arith.constant 0.000000e+00 : f32
    %68 = vector.broadcast %cst_24 : f32 to vector<2x32xf32>
    %69 = arith.subf %68, %67 : vector<2x32xf32>
    %70 = math.exp %69 : vector<2x32xf32>
    %cst_25 = arith.constant 1.000000e+00 : f32
    %71 = vector.broadcast %cst_25 : f32 to vector<2x32xf32>
    %72 = arith.addf %71, %70 : vector<2x32xf32>
    %cst_26 = arith.constant 1.000000e+00 : f32
    %73 = vector.broadcast %cst_26 : f32 to vector<2x32xf32>
    %74 = arith.divf %73, %72 : vector<2x32xf32>
    %75 = vector.extract_strided_slice %66 {offsets = [0, 64], sizes = [2, 32], strides = [1, 1]} : vector<2x128xf32> to vector<2x32xf32>
    %76 = math.tanh %75 : vector<2x32xf32>
    %77 = vector.extract_strided_slice %66 {offsets = [0, 96], sizes = [2, 32], strides = [1, 1]} : vector<2x128xf32> to vector<2x32xf32>
    %cst_27 = arith.constant 0.000000e+00 : f32
    %78 = vector.broadcast %cst_27 : f32 to vector<2x32xf32>
    %79 = arith.subf %78, %77 : vector<2x32xf32>
    %80 = math.exp %79 : vector<2x32xf32>
    %cst_28 = arith.constant 1.000000e+00 : f32
    %81 = vector.broadcast %cst_28 : f32 to vector<2x32xf32>
    %82 = arith.addf %81, %80 : vector<2x32xf32>
    %cst_29 = arith.constant 1.000000e+00 : f32
    %83 = vector.broadcast %cst_29 : f32 to vector<2x32xf32>
    %84 = arith.divf %83, %82 : vector<2x32xf32>
    %85 = arith.mulf %74, %76 : vector<2x32xf32>
    %86 = vector.extract_strided_slice %66 {offsets = [0, 32], sizes = [2, 32], strides = [1, 1]} : vector<2x128xf32> to vector<2x32xf32>
    %cst_30 = arith.constant 0.000000e+00 : f32
    %87 = vector.broadcast %cst_30 : f32 to vector<2x32xf32>
    %88 = arith.subf %87, %86 : vector<2x32xf32>
    %89 = math.exp %88 : vector<2x32xf32>
    %cst_31 = arith.constant 1.000000e+00 : f32
    %90 = vector.broadcast %cst_31 : f32 to vector<2x32xf32>
    %91 = arith.addf %90, %89 : vector<2x32xf32>
    %cst_32 = arith.constant 1.000000e+00 : f32
    %92 = vector.broadcast %cst_32 : f32 to vector<2x32xf32>
    %93 = arith.divf %92, %91 : vector<2x32xf32>
    %94 = arith.mulf %93, %60 : vector<2x32xf32>
    %95 = arith.addf %94, %85 : vector<2x32xf32>
    %96 = math.tanh %95 : vector<2x32xf32>
    %97 = arith.mulf %84, %96 : vector<2x32xf32>
    %98 = arith.maximumf %63, %97 : vector<2x32xf32>
    %99 = vector.extract_strided_slice %5 {offsets = [6, 0], sizes = [2, 128], strides = [1, 1]} : vector<16x128xf32> to vector<2x128xf32>
    %cst_33 = arith.constant dense<0.000000e+00> : vector<2x128xf32>
    %100 = tpu.matmul %97, %6, %cst_33 {dimension_numbers = #tpu.dot_dimension_numbers<[1], [0], [0], [1], [0, 0, 1, 1], [], []>} : vector<2x32xf32>, vector<32x128xf32>, vector<2x128xf32> -> vector<2x128xf32>
    %101 = arith.addf %99, %100 : vector<2x128xf32>
    %102 = vector.extract_strided_slice %101 {offsets = [0, 0], sizes = [2, 32], strides = [1, 1]} : vector<2x128xf32> to vector<2x32xf32>
    %cst_34 = arith.constant 0.000000e+00 : f32
    %103 = vector.broadcast %cst_34 : f32 to vector<2x32xf32>
    %104 = arith.subf %103, %102 : vector<2x32xf32>
    %105 = math.exp %104 : vector<2x32xf32>
    %cst_35 = arith.constant 1.000000e+00 : f32
    %106 = vector.broadcast %cst_35 : f32 to vector<2x32xf32>
    %107 = arith.addf %106, %105 : vector<2x32xf32>
    %cst_36 = arith.constant 1.000000e+00 : f32
    %108 = vector.broadcast %cst_36 : f32 to vector<2x32xf32>
    %109 = arith.divf %108, %107 : vector<2x32xf32>
    %110 = vector.extract_strided_slice %101 {offsets = [0, 64], sizes = [2, 32], strides = [1, 1]} : vector<2x128xf32> to vector<2x32xf32>
    %111 = math.tanh %110 : vector<2x32xf32>
    %112 = vector.extract_strided_slice %101 {offsets = [0, 96], sizes = [2, 32], strides = [1, 1]} : vector<2x128xf32> to vector<2x32xf32>
    %cst_37 = arith.constant 0.000000e+00 : f32
    %113 = vector.broadcast %cst_37 : f32 to vector<2x32xf32>
    %114 = arith.subf %113, %112 : vector<2x32xf32>
    %115 = math.exp %114 : vector<2x32xf32>
    %cst_38 = arith.constant 1.000000e+00 : f32
    %116 = vector.broadcast %cst_38 : f32 to vector<2x32xf32>
    %117 = arith.addf %116, %115 : vector<2x32xf32>
    %cst_39 = arith.constant 1.000000e+00 : f32
    %118 = vector.broadcast %cst_39 : f32 to vector<2x32xf32>
    %119 = arith.divf %118, %117 : vector<2x32xf32>
    %120 = arith.mulf %109, %111 : vector<2x32xf32>
    %121 = vector.extract_strided_slice %101 {offsets = [0, 32], sizes = [2, 32], strides = [1, 1]} : vector<2x128xf32> to vector<2x32xf32>
    %cst_40 = arith.constant 0.000000e+00 : f32
    %122 = vector.broadcast %cst_40 : f32 to vector<2x32xf32>
    %123 = arith.subf %122, %121 : vector<2x32xf32>
    %124 = math.exp %123 : vector<2x32xf32>
    %cst_41 = arith.constant 1.000000e+00 : f32
    %125 = vector.broadcast %cst_41 : f32 to vector<2x32xf32>
    %126 = arith.addf %125, %124 : vector<2x32xf32>
    %cst_42 = arith.constant 1.000000e+00 : f32
    %127 = vector.broadcast %cst_42 : f32 to vector<2x32xf32>
    %128 = arith.divf %127, %126 : vector<2x32xf32>
    %129 = arith.mulf %128, %95 : vector<2x32xf32>
    %130 = arith.addf %129, %120 : vector<2x32xf32>
    %131 = math.tanh %130 : vector<2x32xf32>
    %132 = arith.mulf %119, %131 : vector<2x32xf32>
    %133 = arith.maximumf %98, %132 : vector<2x32xf32>
    %134 = vector.extract_strided_slice %5 {offsets = [8, 0], sizes = [2, 128], strides = [1, 1]} : vector<16x128xf32> to vector<2x128xf32>
    %cst_43 = arith.constant dense<0.000000e+00> : vector<2x128xf32>
    %135 = tpu.matmul %132, %6, %cst_43 {dimension_numbers = #tpu.dot_dimension_numbers<[1], [0], [0], [1], [0, 0, 1, 1], [], []>} : vector<2x32xf32>, vector<32x128xf32>, vector<2x128xf32> -> vector<2x128xf32>
    %136 = arith.addf %134, %135 : vector<2x128xf32>
    %137 = vector.extract_strided_slice %136 {offsets = [0, 0], sizes = [2, 32], strides = [1, 1]} : vector<2x128xf32> to vector<2x32xf32>
    %cst_44 = arith.constant 0.000000e+00 : f32
    %138 = vector.broadcast %cst_44 : f32 to vector<2x32xf32>
    %139 = arith.subf %138, %137 : vector<2x32xf32>
    %140 = math.exp %139 : vector<2x32xf32>
    %cst_45 = arith.constant 1.000000e+00 : f32
    %141 = vector.broadcast %cst_45 : f32 to vector<2x32xf32>
    %142 = arith.addf %141, %140 : vector<2x32xf32>
    %cst_46 = arith.constant 1.000000e+00 : f32
    %143 = vector.broadcast %cst_46 : f32 to vector<2x32xf32>
    %144 = arith.divf %143, %142 : vector<2x32xf32>
    %145 = vector.extract_strided_slice %136 {offsets = [0, 64], sizes = [2, 32], strides = [1, 1]} : vector<2x128xf32> to vector<2x32xf32>
    %146 = math.tanh %145 : vector<2x32xf32>
    %147 = vector.extract_strided_slice %136 {offsets = [0, 96], sizes = [2, 32], strides = [1, 1]} : vector<2x128xf32> to vector<2x32xf32>
    %cst_47 = arith.constant 0.000000e+00 : f32
    %148 = vector.broadcast %cst_47 : f32 to vector<2x32xf32>
    %149 = arith.subf %148, %147 : vector<2x32xf32>
    %150 = math.exp %149 : vector<2x32xf32>
    %cst_48 = arith.constant 1.000000e+00 : f32
    %151 = vector.broadcast %cst_48 : f32 to vector<2x32xf32>
    %152 = arith.addf %151, %150 : vector<2x32xf32>
    %cst_49 = arith.constant 1.000000e+00 : f32
    %153 = vector.broadcast %cst_49 : f32 to vector<2x32xf32>
    %154 = arith.divf %153, %152 : vector<2x32xf32>
    %155 = arith.mulf %144, %146 : vector<2x32xf32>
    %156 = vector.extract_strided_slice %136 {offsets = [0, 32], sizes = [2, 32], strides = [1, 1]} : vector<2x128xf32> to vector<2x32xf32>
    %cst_50 = arith.constant 0.000000e+00 : f32
    %157 = vector.broadcast %cst_50 : f32 to vector<2x32xf32>
    %158 = arith.subf %157, %156 : vector<2x32xf32>
    %159 = math.exp %158 : vector<2x32xf32>
    %cst_51 = arith.constant 1.000000e+00 : f32
    %160 = vector.broadcast %cst_51 : f32 to vector<2x32xf32>
    %161 = arith.addf %160, %159 : vector<2x32xf32>
    %cst_52 = arith.constant 1.000000e+00 : f32
    %162 = vector.broadcast %cst_52 : f32 to vector<2x32xf32>
    %163 = arith.divf %162, %161 : vector<2x32xf32>
    %164 = arith.mulf %163, %130 : vector<2x32xf32>
    %165 = arith.addf %164, %155 : vector<2x32xf32>
    %166 = math.tanh %165 : vector<2x32xf32>
    %167 = arith.mulf %154, %166 : vector<2x32xf32>
    %168 = arith.maximumf %133, %167 : vector<2x32xf32>
    %169 = vector.extract_strided_slice %5 {offsets = [10, 0], sizes = [2, 128], strides = [1, 1]} : vector<16x128xf32> to vector<2x128xf32>
    %cst_53 = arith.constant dense<0.000000e+00> : vector<2x128xf32>
    %170 = tpu.matmul %167, %6, %cst_53 {dimension_numbers = #tpu.dot_dimension_numbers<[1], [0], [0], [1], [0, 0, 1, 1], [], []>} : vector<2x32xf32>, vector<32x128xf32>, vector<2x128xf32> -> vector<2x128xf32>
    %171 = arith.addf %169, %170 : vector<2x128xf32>
    %172 = vector.extract_strided_slice %171 {offsets = [0, 0], sizes = [2, 32], strides = [1, 1]} : vector<2x128xf32> to vector<2x32xf32>
    %cst_54 = arith.constant 0.000000e+00 : f32
    %173 = vector.broadcast %cst_54 : f32 to vector<2x32xf32>
    %174 = arith.subf %173, %172 : vector<2x32xf32>
    %175 = math.exp %174 : vector<2x32xf32>
    %cst_55 = arith.constant 1.000000e+00 : f32
    %176 = vector.broadcast %cst_55 : f32 to vector<2x32xf32>
    %177 = arith.addf %176, %175 : vector<2x32xf32>
    %cst_56 = arith.constant 1.000000e+00 : f32
    %178 = vector.broadcast %cst_56 : f32 to vector<2x32xf32>
    %179 = arith.divf %178, %177 : vector<2x32xf32>
    %180 = vector.extract_strided_slice %171 {offsets = [0, 64], sizes = [2, 32], strides = [1, 1]} : vector<2x128xf32> to vector<2x32xf32>
    %181 = math.tanh %180 : vector<2x32xf32>
    %182 = vector.extract_strided_slice %171 {offsets = [0, 96], sizes = [2, 32], strides = [1, 1]} : vector<2x128xf32> to vector<2x32xf32>
    %cst_57 = arith.constant 0.000000e+00 : f32
    %183 = vector.broadcast %cst_57 : f32 to vector<2x32xf32>
    %184 = arith.subf %183, %182 : vector<2x32xf32>
    %185 = math.exp %184 : vector<2x32xf32>
    %cst_58 = arith.constant 1.000000e+00 : f32
    %186 = vector.broadcast %cst_58 : f32 to vector<2x32xf32>
    %187 = arith.addf %186, %185 : vector<2x32xf32>
    %cst_59 = arith.constant 1.000000e+00 : f32
    %188 = vector.broadcast %cst_59 : f32 to vector<2x32xf32>
    %189 = arith.divf %188, %187 : vector<2x32xf32>
    %190 = arith.mulf %179, %181 : vector<2x32xf32>
    %191 = vector.extract_strided_slice %171 {offsets = [0, 32], sizes = [2, 32], strides = [1, 1]} : vector<2x128xf32> to vector<2x32xf32>
    %cst_60 = arith.constant 0.000000e+00 : f32
    %192 = vector.broadcast %cst_60 : f32 to vector<2x32xf32>
    %193 = arith.subf %192, %191 : vector<2x32xf32>
    %194 = math.exp %193 : vector<2x32xf32>
    %cst_61 = arith.constant 1.000000e+00 : f32
    %195 = vector.broadcast %cst_61 : f32 to vector<2x32xf32>
    %196 = arith.addf %195, %194 : vector<2x32xf32>
    %cst_62 = arith.constant 1.000000e+00 : f32
    %197 = vector.broadcast %cst_62 : f32 to vector<2x32xf32>
    %198 = arith.divf %197, %196 : vector<2x32xf32>
    %199 = arith.mulf %198, %165 : vector<2x32xf32>
    %200 = arith.addf %199, %190 : vector<2x32xf32>
    %201 = math.tanh %200 : vector<2x32xf32>
    %202 = arith.mulf %189, %201 : vector<2x32xf32>
    %203 = arith.maximumf %168, %202 : vector<2x32xf32>
    %204 = vector.extract_strided_slice %5 {offsets = [12, 0], sizes = [2, 128], strides = [1, 1]} : vector<16x128xf32> to vector<2x128xf32>
    %cst_63 = arith.constant dense<0.000000e+00> : vector<2x128xf32>
    %205 = tpu.matmul %202, %6, %cst_63 {dimension_numbers = #tpu.dot_dimension_numbers<[1], [0], [0], [1], [0, 0, 1, 1], [], []>} : vector<2x32xf32>, vector<32x128xf32>, vector<2x128xf32> -> vector<2x128xf32>
    %206 = arith.addf %204, %205 : vector<2x128xf32>
    %207 = vector.extract_strided_slice %206 {offsets = [0, 0], sizes = [2, 32], strides = [1, 1]} : vector<2x128xf32> to vector<2x32xf32>
    %cst_64 = arith.constant 0.000000e+00 : f32
    %208 = vector.broadcast %cst_64 : f32 to vector<2x32xf32>
    %209 = arith.subf %208, %207 : vector<2x32xf32>
    %210 = math.exp %209 : vector<2x32xf32>
    %cst_65 = arith.constant 1.000000e+00 : f32
    %211 = vector.broadcast %cst_65 : f32 to vector<2x32xf32>
    %212 = arith.addf %211, %210 : vector<2x32xf32>
    %cst_66 = arith.constant 1.000000e+00 : f32
    %213 = vector.broadcast %cst_66 : f32 to vector<2x32xf32>
    %214 = arith.divf %213, %212 : vector<2x32xf32>
    %215 = vector.extract_strided_slice %206 {offsets = [0, 64], sizes = [2, 32], strides = [1, 1]} : vector<2x128xf32> to vector<2x32xf32>
    %216 = math.tanh %215 : vector<2x32xf32>
    %217 = vector.extract_strided_slice %206 {offsets = [0, 96], sizes = [2, 32], strides = [1, 1]} : vector<2x128xf32> to vector<2x32xf32>
    %cst_67 = arith.constant 0.000000e+00 : f32
    %218 = vector.broadcast %cst_67 : f32 to vector<2x32xf32>
    %219 = arith.subf %218, %217 : vector<2x32xf32>
    %220 = math.exp %219 : vector<2x32xf32>
    %cst_68 = arith.constant 1.000000e+00 : f32
    %221 = vector.broadcast %cst_68 : f32 to vector<2x32xf32>
    %222 = arith.addf %221, %220 : vector<2x32xf32>
    %cst_69 = arith.constant 1.000000e+00 : f32
    %223 = vector.broadcast %cst_69 : f32 to vector<2x32xf32>
    %224 = arith.divf %223, %222 : vector<2x32xf32>
    %225 = arith.mulf %214, %216 : vector<2x32xf32>
    %226 = vector.extract_strided_slice %206 {offsets = [0, 32], sizes = [2, 32], strides = [1, 1]} : vector<2x128xf32> to vector<2x32xf32>
    %cst_70 = arith.constant 0.000000e+00 : f32
    %227 = vector.broadcast %cst_70 : f32 to vector<2x32xf32>
    %228 = arith.subf %227, %226 : vector<2x32xf32>
    %229 = math.exp %228 : vector<2x32xf32>
    %cst_71 = arith.constant 1.000000e+00 : f32
    %230 = vector.broadcast %cst_71 : f32 to vector<2x32xf32>
    %231 = arith.addf %230, %229 : vector<2x32xf32>
    %cst_72 = arith.constant 1.000000e+00 : f32
    %232 = vector.broadcast %cst_72 : f32 to vector<2x32xf32>
    %233 = arith.divf %232, %231 : vector<2x32xf32>
    %234 = arith.mulf %233, %200 : vector<2x32xf32>
    %235 = arith.addf %234, %225 : vector<2x32xf32>
    %236 = math.tanh %235 : vector<2x32xf32>
    %237 = arith.mulf %224, %236 : vector<2x32xf32>
    %238 = arith.maximumf %203, %237 : vector<2x32xf32>
    %239 = vector.extract_strided_slice %5 {offsets = [14, 0], sizes = [2, 128], strides = [1, 1]} : vector<16x128xf32> to vector<2x128xf32>
    %cst_73 = arith.constant dense<0.000000e+00> : vector<2x128xf32>
    %240 = tpu.matmul %237, %6, %cst_73 {dimension_numbers = #tpu.dot_dimension_numbers<[1], [0], [0], [1], [0, 0, 1, 1], [], []>} : vector<2x32xf32>, vector<32x128xf32>, vector<2x128xf32> -> vector<2x128xf32>
    %241 = arith.addf %239, %240 : vector<2x128xf32>
    %242 = vector.extract_strided_slice %241 {offsets = [0, 0], sizes = [2, 32], strides = [1, 1]} : vector<2x128xf32> to vector<2x32xf32>
    %cst_74 = arith.constant 0.000000e+00 : f32
    %243 = vector.broadcast %cst_74 : f32 to vector<2x32xf32>
    %244 = arith.subf %243, %242 : vector<2x32xf32>
    %245 = math.exp %244 : vector<2x32xf32>
    %cst_75 = arith.constant 1.000000e+00 : f32
    %246 = vector.broadcast %cst_75 : f32 to vector<2x32xf32>
    %247 = arith.addf %246, %245 : vector<2x32xf32>
    %cst_76 = arith.constant 1.000000e+00 : f32
    %248 = vector.broadcast %cst_76 : f32 to vector<2x32xf32>
    %249 = arith.divf %248, %247 : vector<2x32xf32>
    %250 = vector.extract_strided_slice %241 {offsets = [0, 64], sizes = [2, 32], strides = [1, 1]} : vector<2x128xf32> to vector<2x32xf32>
    %251 = math.tanh %250 : vector<2x32xf32>
    %252 = vector.extract_strided_slice %241 {offsets = [0, 96], sizes = [2, 32], strides = [1, 1]} : vector<2x128xf32> to vector<2x32xf32>
    %cst_77 = arith.constant 0.000000e+00 : f32
    %253 = vector.broadcast %cst_77 : f32 to vector<2x32xf32>
    %254 = arith.subf %253, %252 : vector<2x32xf32>
    %255 = math.exp %254 : vector<2x32xf32>
    %cst_78 = arith.constant 1.000000e+00 : f32
    %256 = vector.broadcast %cst_78 : f32 to vector<2x32xf32>
    %257 = arith.addf %256, %255 : vector<2x32xf32>
    %cst_79 = arith.constant 1.000000e+00 : f32
    %258 = vector.broadcast %cst_79 : f32 to vector<2x32xf32>
    %259 = arith.divf %258, %257 : vector<2x32xf32>
    %260 = arith.mulf %249, %251 : vector<2x32xf32>
    %261 = vector.extract_strided_slice %241 {offsets = [0, 32], sizes = [2, 32], strides = [1, 1]} : vector<2x128xf32> to vector<2x32xf32>
    %cst_80 = arith.constant 0.000000e+00 : f32
    %262 = vector.broadcast %cst_80 : f32 to vector<2x32xf32>
    %263 = arith.subf %262, %261 : vector<2x32xf32>
    %264 = math.exp %263 : vector<2x32xf32>
    %cst_81 = arith.constant 1.000000e+00 : f32
    %265 = vector.broadcast %cst_81 : f32 to vector<2x32xf32>
    %266 = arith.addf %265, %264 : vector<2x32xf32>
    %cst_82 = arith.constant 1.000000e+00 : f32
    %267 = vector.broadcast %cst_82 : f32 to vector<2x32xf32>
    %268 = arith.divf %267, %266 : vector<2x32xf32>
    %269 = arith.mulf %268, %235 : vector<2x32xf32>
    %270 = arith.addf %269, %260 : vector<2x32xf32>
    %271 = math.tanh %270 : vector<2x32xf32>
    %272 = arith.mulf %259, %271 : vector<2x32xf32>
    %273 = arith.maximumf %238, %272 : vector<2x32xf32>
    %c0_83 = arith.constant 0 : index
    %c0_84 = arith.constant 0 : index
    %274 = vector.load %arg4[%c0_83, %c0_84] : memref<32x4xf32, #tpu.memory_space<vmem>>, vector<32x4xf32>
    %cst_85 = arith.constant dense<0.000000e+00> : vector<2x4xf32>
    %275 = tpu.matmul %273, %274, %cst_85 {dimension_numbers = #tpu.dot_dimension_numbers<[1], [0], [0], [1], [0, 0, 1, 1], [], []>} : vector<2x32xf32>, vector<32x4xf32>, vector<2x4xf32> -> vector<2x4xf32>
    %c0_86 = arith.constant 0 : index
    %c0_87 = arith.constant 0 : index
    %276 = vector.load %arg5[%c0_86, %c0_87] : memref<1x4xf32, #tpu.memory_space<vmem>>, vector<1x4xf32>
    %277 = vector.broadcast %276 : vector<1x4xf32> to vector<2x4xf32>
    %278 = arith.addf %275, %277 : vector<2x4xf32>
    %c0_88 = arith.constant 0 : index
    %c0_89 = arith.constant 0 : index
    %279 = vector.load %arg6[%c0_88, %c0_89] : memref<2x4xf32, #tpu.memory_space<vmem>>, vector<2x4xf32>
    tpu.vector_store %arg6[%c0_88, %c0_89], %278 {strides = array<i32>} : memref<2x4xf32, #tpu.memory_space<vmem>>, vector<2x4xf32>,
    return
  }
}

</mosaic_0001>

<llo_original>
// kernel: tpu_custom_call.1
$region0: #{tpu_custom_call.1}
  #allocation0 [shape = 'u32[]', space=smem, size = 0x4, offset = 0x4, fixed_abs, tag = 'smem constant byte address 0x4 - core index']
  #allocation1 [shape = 'u32[144,128]{1,0:T(1,128)}', space=vmem, size = 0x12000, scoped, tag = 'internal scratch']
  %s0 = inlined_call_operand.hbm [shape: f32[16,32], index: 0, kind: input, shape index: {}]
  %s1 = inlined_call_operand.vmem [shape: f32[32,128], index: 1, kind: input, shape index: {}]
  %s2 = inlined_call_operand.hbm [shape: f32[32,128], index: 2, kind: input, shape index: {}]
  %s3 = inlined_call_operand.vmem [shape: f32[1,128], index: 3, kind: input, shape index: {}]
  %s4 = inlined_call_operand.vmem [shape: f32[32,4], index: 4, kind: input, shape index: {}]
  %s5 = inlined_call_operand.vmem [shape: f32[1,4], index: 5, kind: input, shape index: {}]
  %s6 = inlined_call_operand.hbm [shape: f32[2,4], index: 6, kind: output, shape index: {}]
  %s7 = sld [smem:[#allocation0]]
  $region42: #{tpu_custom_call.1} parent=0
    _
  %s9 = ssub.s32 1, %s7
  %s10 = scalar_select 0, %s9, %s7
  $region1: #{tpu_custom_call.1} parent=0
    #allocation2 [shape = 'u8[8192]{0}', space=vmem, size = 0x2000, scoped, tag = 'input window, operand 0, single buffered']
    #allocation3 [shape = 's32[1]{0}', space=sflag, size = 0x4, scoped, tag = 'scoped memory for tpu_custom_call.1']
    #allocation4 [shape = 's32[1]{0}', space=sflag, size = 0x4, scoped, tag = 'scoped memory for tpu_custom_call.1']
    #allocation5 [shape = 'u8[16384]{0}', space=vmem, size = 0x4000, scoped, tag = 'input window, operand 2, single buffered']
    #allocation6 [shape = 's32[1]{0}', space=sflag, size = 0x4, scoped, tag = 'scoped memory for tpu_custom_call.1']
    #allocation7 [shape = 'u8[1024]{0}', space=vmem, size = 0x400, scoped, tag = 'output window, operand 0, single buffered']
    %11 = vsyncpa [#allocation3], 0
    %12 = vsyncpa [#allocation6], 0
    %13 = vsyncpa [#allocation4], 0
    // Predicated region
    $region2: #{tpu_custom_call.1} parent=1 // pred_check
      _
    $region3: #{tpu_custom_call.1} parent=1 // pred_check_branch
      %15 = sbr.rel (0) target = $region5
    $region4: #{tpu_custom_call.1} parent=1 // pred_region
      %s17 = ssub.s32 256, 256
      %18 = vsyncadd [#allocation3], %s17
      %s19 = sshll.u32 [#allocation2], 4
      %s20 = int_to_ptr.vmem [resolvable:$true] %s19
      %25 = dma.hbm_to_vmem [thread:$0]  %s0, 256, %s20, [#allocation3], 128, 128, 8
    $region5: #{tpu_custom_call.1} parent=1 // pred_fallthru
      _
    // Predicated region
    $region6: #{tpu_custom_call.1} parent=1 // pred_check
      _
    $region7: #{tpu_custom_call.1} parent=1 // pred_check_branch
      %27 = sbr.rel (0) target = $region9
    $region8: #{tpu_custom_call.1} parent=1 // pred_region
      _
    $region9: #{tpu_custom_call.1} parent=1 // pred_fallthru
      _
    // Predicated region
    $region10: #{tpu_custom_call.1} parent=1 // pred_check
      _
    $region11: #{tpu_custom_call.1} parent=1 // pred_check_branch
      %29 = sbr.rel (0) target = $region13
    $region12: #{tpu_custom_call.1} parent=1 // pred_region
      %s31 = ssub.s32 512, 512
      %32 = vsyncadd [#allocation6], %s31
      %s33 = sshll.u32 [#allocation5], 4
      %s34 = int_to_ptr.vmem [resolvable:$true] %s33
      %39 = dma.hbm_to_vmem [thread:$0]  %s2, 512, %s34, [#allocation6], 128, 128, 8
    $region13: #{tpu_custom_call.1} parent=1 // pred_fallthru
      _
    // Predicated region
    $region14: #{tpu_custom_call.1} parent=1 // pred_check
      _
    $region15: #{tpu_custom_call.1} parent=1 // pred_check_branch
      %41 = sbr.rel (0) target = $region17
    $region16: #{tpu_custom_call.1} parent=1 // pred_region
      _
    $region17: #{tpu_custom_call.1} parent=1 // pred_fallthru
      _
    // Predicated region
    $region18: #{tpu_custom_call.1} parent=1 // pred_check
      _
    $region19: #{tpu_custom_call.1} parent=1 // pred_check_branch
      %43 = sbr.rel (0) target = $region21
    $region20: #{tpu_custom_call.1} parent=1 // pred_region
      _
    $region21: #{tpu_custom_call.1} parent=1 // pred_fallthru
      _
    // Predicated region
    $region22: #{tpu_custom_call.1} parent=1 // pred_check
      _
    $region23: #{tpu_custom_call.1} parent=1 // pred_check_branch
      %45 = sbr.rel (0) target = $region25
    $region24: #{tpu_custom_call.1} parent=1 // pred_region
      _
    $region25: #{tpu_custom_call.1} parent=1 // pred_fallthru
      _
    // Predicated region
    $region26: #{tpu_custom_call.1} parent=1 // pred_check
      _
    $region27: #{tpu_custom_call.1} parent=1 // pred_check_branch
      %47 = sbr.rel (0) target = $region29
    $region28: #{tpu_custom_call.1} parent=1 // pred_region
      %48 = dma.done [#allocation3], 256
    $region29: #{tpu_custom_call.1} parent=1 // pred_fallthru
      _
    // Predicated region
    $region30: #{tpu_custom_call.1} parent=1 // pred_check
      _
    $region31: #{tpu_custom_call.1} parent=1 // pred_check_branch
      %50 = sbr.rel (0) target = $region33
    $region32: #{tpu_custom_call.1} parent=1 // pred_region
      %51 = dma.done [#allocation6], 512
    $region33: #{tpu_custom_call.1} parent=1 // pred_fallthru
      _
    %v52 = vld [vmem:[#allocation2] sm:$0xff]
    %v53 = vld [vmem:[#allocation2 + $0x8] sm:$0xff]
    %v54 = vld [vmem:[%s1] sm:$0xff]
    %v55 = vld [vmem:[%s1 + $0x8] sm:$0xff]
    %v56 = vld [vmem:[%s1 + $0x10] sm:$0xff]
    %v57 = vld [vmem:[%s1 + $0x18] sm:$0xff]
    %v58 = vld [vmem:[%s3] sm:$0x1]
    %v60 = vlaneseq
    %v61 = vshrl.u32 %v60, 7
    %v62 = vsub.s32 0, %v61
    %v63 = vrot.slane %v58, %v62
    %vm65 = vcmask 261120
    %v67 = vsel %vm65, %v52, 0
    %v70 = vsel %vm65, %v53, 0
    %72 = vmatprep.subr.mxu0 0.0
    %73 = vmatpush1.msra.mxu0 %v54
    %74 = vmatprep.subr.mxu0 0.0
    %75 = vmatpush1.msra.mxu0 %v55
    %76 = vmatprep.subr.mxu0 0.0
    %77 = vmatpush1.msra.mxu0 %v56
    %78 = vmatprep.subr.mxu0 0.0
    %79 = vmatpush1.msra.mxu0 %v57
    %80 = vmatprep.subr.mxu0 0.0
    %81 = vmatpush1.msra.mxu0 0.0
    %82 = vmatprep.subr.mxu0 0.0
    %83 = vmatpush1.msra.mxu0 0.0
    %84 = vmatprep.subr.mxu0 0.0
    %85 = vmatpush1.msra.mxu0 0.0
    %86 = vmatprep.subr.mxu0 0.0
    %87 = vmatpush1.msra.mxu0 0.0
    %88 = vmatprep.subr.mxu0 0.0
    %89 = vmatpush1.msra.mxu0 0.0
    %90 = vmatprep.subr.mxu0 0.0
    %91 = vmatpush1.msra.mxu0 0.0
    %92 = vmatprep.subr.mxu0 0.0
    %93 = vmatpush1.msra.mxu0 0.0
    %94 = vmatprep.subr.mxu0 0.0
    %95 = vmatpush1.msra.mxu0 0.0
    %96 = vmatprep.subr.mxu0 0.0
    %97 = vmatpush1.msra.mxu0 0.0
    %98 = vmatprep.subr.mxu0 0.0
    %99 = vmatpush1.msra.mxu0 0.0
    %100 = vmatprep.subr.mxu0 0.0
    %101 = vmatpush1.msra.mxu0 0.0
    %102 = vmatprep.subr.mxu0 0.0
    %103 = vmatpush1.msra.mxu0 0.0
    %104 = vmatprep.subr.mxu0 0.0
    %105 = vmatpush1.msra.mxu0 0.0
    %106 = vmatprep.subr.mxu0 0.0
    %107 = vmatpush1.msra.mxu0 0.0
    %108 = vmatprep.subr.mxu0 0.0
    %109 = vmatpush1.msra.mxu0 0.0
    %110 = vmatprep.subr.mxu0 0.0
    %111 = vmatpush1.msra.mxu0 0.0
    %112 = vmatprep.subr.mxu0 0.0
    %113 = vmatpush1.msra.mxu0 0.0
    %114 = vmatprep.subr.mxu0 0.0
    %115 = vmatpush1.msra.mxu0 0.0
    %116 = vmatprep.subr.mxu0 0.0
    %117 = vmatpush1.msra.mxu0 0.0
    %118 = vmatprep.subr.mxu0 0.0
    %119 = vmatpush1.msra.mxu0 0.0
    %120 = vmatprep.subr.mxu0 0.0
    %121 = vmatpush1.msra.mxu0 0.0
    %122 = vmatprep.subr.mxu0 0.0
    %123 = vmatpush1.msra.mxu0 0.0
    %124 = vmatprep.subr.mxu0 0.0
    %125 = vmatpush1.msra.mxu0 0.0
    %126 = vmatprep.subr.mxu0 0.0
    %127 = vmatpush1.msra.mxu0 0.0
    %128 = vmatprep.subr.mxu0 0.0
    %129 = vmatpush1.msra.mxu0 0.0
    %130 = vmatprep.subr.mxu0 0.0
    %131 = vmatpush1.msra.mxu0 0.0
    %132 = vmatprep.subr.mxu0 0.0
    %133 = vmatpush1.msra.mxu0 0.0
    %134 = vmatprep.subr.mxu0 0.0
    %135 = vmatpush1.msra.mxu0 0.0
    %136 = vmatprep.mubr.f32.mxu0 0.0
    %137 = vmatmul.mubr.f32.gmra.mrb[0].mxu0 %v67
    %v138 = vpop.f32.mrb[0].mxu0
    %v139 = vadd.f32 %v63, %v138
    %v140 = vpop.f32.mrb[0].mxu0
    %141 = vmatprep.mubr.f32.mxu0 0.0
    %142 = vmatmul.mubr.f32.gmra.mrb[0].mxu0 %v70
    %v143 = vpop.f32.mrb[0].mxu0
    %v144 = vadd.f32 %v63, %v143
    %v145 = vpop.f32.mrb[0].mxu0
    %146 = vdwg.mxu0
    %v147 = vld [vmem:[#allocation5] sm:$0xff]
    %v148 = vld [vmem:[#allocation5 + $0x8] sm:$0xff]
    %v149 = vld [vmem:[#allocation5 + $0x10] sm:$0xff]
    %v150 = vld [vmem:[#allocation5 + $0x18] sm:$0xff]
    %v151 = vsub.f32 0.0, %v139
    %v152 = vmul.f32 %v151, 1.442695
    %v153 = vpow.pop %v152
    %v154 = vadd.f32 %v153, 1.0
    %v155 = vrcp.pop %v154
    %v156 = vmul.f32 1.0, %v155
    %v157 = vtanh.pop %v139
    %159 = vrot.lane.b32.xlu0 %v157, 64
    %v160 = vpop.permute.xlu0 %159
    %v162 = vmul.f32 %v156, %v160
    %v163 = vtanh.pop %v162
    %165 = vrot.lane.b32.xlu0 %v163, 96
    %v166 = vpop.permute.xlu0 %165
    %v168 = vmul.f32 %v156, %v166
    %170 = vrot.lane.b32.xlu0 %v168, 32
    %v171 = vpop.permute.xlu0 %170
    %v172 = vsel %vm65, %v171, 0
    %174 = vmatprep.subr.mxu0 0.0
    %175 = vmatpush1.msra.mxu0 %v147
    %176 = vmatprep.subr.mxu0 0.0
    %177 = vmatpush1.msra.mxu0 %v148
    %178 = vmatprep.subr.mxu0 0.0
    %179 = vmatpush1.msra.mxu0 %v149
    %180 = vmatprep.subr.mxu0 0.0
    %181 = vmatpush1.msra.mxu0 %v150
    %182 = vmatprep.subr.mxu0 0.0
    %183 = vmatpush1.msra.mxu0 0.0
    %184 = vmatprep.subr.mxu0 0.0
    %185 = vmatpush1.msra.mxu0 0.0
    %186 = vmatprep.subr.mxu0 0.0
    %187 = vmatpush1.msra.mxu0 0.0
    %188 = vmatprep.subr.mxu0 0.0
    %189 = vmatpush1.msra.mxu0 0.0
    %190 = vmatprep.subr.mxu0 0.0
    %191 = vmatpush1.msra.mxu0 0.0
    %192 = vmatprep.subr.mxu0 0.0
    %193 = vmatpush1.msra.mxu0 0.0
    %194 = vmatprep.subr.mxu0 0.0
    %195 = vmatpush1.msra.mxu0 0.0
    %196 = vmatprep.subr.mxu0 0.0
    %197 = vmatpush1.msra.mxu0 0.0
    %198 = vmatprep.subr.mxu0 0.0
    %199 = vmatpush1.msra.mxu0 0.0
    %200 = vmatprep.subr.mxu0 0.0
    %201 = vmatpush1.msra.mxu0 0.0
    %202 = vmatprep.subr.mxu0 0.0
    %203 = vmatpush1.msra.mxu0 0.0
    %204 = vmatprep.subr.mxu0 0.0
    %205 = vmatpush1.msra.mxu0 0.0
    %206 = vmatprep.subr.mxu0 0.0
    %207 = vmatpush1.msra.mxu0 0.0
    %208 = vmatprep.subr.mxu0 0.0
    %209 = vmatpush1.msra.mxu0 0.0
    %210 = vmatprep.subr.mxu0 0.0
    %211 = vmatpush1.msra.mxu0 0.0
    %212 = vmatprep.subr.mxu0 0.0
    %213 = vmatpush1.msra.mxu0 0.0
    %214 = vmatprep.subr.mxu0 0.0
    %215 = vmatpush1.msra.mxu0 0.0
    %216 = vmatprep.subr.mxu0 0.0
    %217 = vmatpush1.msra.mxu0 0.0
    %218 = vmatprep.subr.mxu0 0.0
    %219 = vmatpush1.msra.mxu0 0.0
    %220 = vmatprep.subr.mxu0 0.0
    %221 = vmatpush1.msra.mxu0 0.0
    %222 = vmatprep.subr.mxu0 0.0
    %223 = vmatpush1.msra.mxu0 0.0
    %224 = vmatprep.subr.mxu0 0.0
    %225 = vmatpush1.msra.mxu0 0.0
    %226 = vmatprep.subr.mxu0 0.0
    %227 = vmatpush1.msra.mxu0 0.0
    %228 = vmatprep.subr.mxu0 0.0
    %229 = vmatpush1.msra.mxu0 0.0
    %230 = vmatprep.subr.mxu0 0.0
    %231 = vmatpush1.msra.mxu0 0.0
    %232 = vmatprep.subr.mxu0 0.0
    %233 = vmatpush1.msra.mxu0 0.0
    %234 = vmatprep.subr.mxu0 0.0
    %235 = vmatpush1.msra.mxu0 0.0
    %236 = vmatprep.subr.mxu0 0.0
    %237 = vmatpush1.msra.mxu0 0.0
    %238 = vmatprep.mubr.f32.mxu0 0.0
    %239 = vmatmul.mubr.f32.gmra.mrb[0].mxu0 %v172
    %v240 = vpop.f32.mrb[0].mxu0
    %v241 = vadd.f32 0.0, %v240
    %v242 = vpop.f32.mrb[0].mxu0
    %243 = vdwg.mxu0
    %v245 = vrot.slane %v241, 6
    %v247 = vadd.f32 %v139, %v245
    %v248 = vsub.f32 0.0, %v247
    %v249 = vmul.f32 %v248, 1.442695
    %v250 = vpow.pop %v249
    %v251 = vadd.f32 %v250, 1.0
    %v252 = vrcp.pop %v251
    %v253 = vmul.f32 1.0, %v252
    %v254 = vtanh.pop %v247
    %256 = vrot.lane.b32.xlu0 %v254, 64
    %v257 = vpop.permute.xlu0 %256
    %v259 = vmul.f32 %v253, %v257
    %v261 = vrot.slane %v162, 6
    %262 = vrot.lane.b32.xlu0 %v261, 32
    %v263 = vpop.permute.xlu0 %262
    %v265 = vmul.f32 %v253, %v263
    %267 = vrot.lane.b32.xlu0 %v259, 32
    %v268 = vpop.permute.xlu0 %267
    %v270 = vadd.f32 %v265, %v268
    %v271 = vtanh.pop %v270
    %273 = vrot.lane.b32.xlu0 %v271, 64
    %v274 = vpop.permute.xlu0 %273
    %v276 = vmul.f32 %v253, %v274
    %v278 = vrot.slane %v276, 2
    %v280 = vmax.f32 %v168, %v278
    %281 = vrot.lane.b32.xlu0 %v278, 32
    %v282 = vpop.permute.xlu0 %281
    %v283 = vsel %vm65, %v282, 0
    %285 = vmatprep.subr.mxu0 0.0
    %286 = vmatpush1.msra.mxu0 %v147
    %287 = vmatprep.subr.mxu0 0.0
    %288 = vmatpush1.msra.mxu0 %v148
    %289 = vmatprep.subr.mxu0 0.0
    %290 = vmatpush1.msra.mxu0 %v149
    %291 = vmatprep.subr.mxu0 0.0
    %292 = vmatpush1.msra.mxu0 %v150
    %293 = vmatprep.subr.mxu0 0.0
    %294 = vmatpush1.msra.mxu0 0.0
    %295 = vmatprep.subr.mxu0 0.0
    %296 = vmatpush1.msra.mxu0 0.0
    %297 = vmatprep.subr.mxu0 0.0
    %298 = vmatpush1.msra.mxu0 0.0
    %299 = vmatprep.subr.mxu0 0.0
    %300 = vmatpush1.msra.mxu0 0.0
    %301 = vmatprep.subr.mxu0 0.0
    %302 = vmatpush1.msra.mxu0 0.0
    %303 = vmatprep.subr.mxu0 0.0
    %304 = vmatpush1.msra.mxu0 0.0
    %305 = vmatprep.subr.mxu0 0.0
    %306 = vmatpush1.msra.mxu0 0.0
    %307 = vmatprep.subr.mxu0 0.0
    %308 = vmatpush1.msra.mxu0 0.0
    %309 = vmatprep.subr.mxu0 0.0
    %310 = vmatpush1.msra.mxu0 0.0
    %311 = vmatprep.subr.mxu0 0.0
    %312 = vmatpush1.msra.mxu0 0.0
    %313 = vmatprep.subr.mxu0 0.0
    %314 = vmatpush1.msra.mxu0 0.0
    %315 = vmatprep.subr.mxu0 0.0
    %316 = vmatpush1.msra.mxu0 0.0
    %317 = vmatprep.subr.mxu0 0.0
    %318 = vmatpush1.msra.mxu0 0.0
    %319 = vmatprep.subr.mxu0 0.0
    %320 = vmatpush1.msra.mxu0 0.0
    %321 = vmatprep.subr.mxu0 0.0
    %322 = vmatpush1.msra.mxu0 0.0
    %323 = vmatprep.subr.mxu0 0.0
    %324 = vmatpush1.msra.mxu0 0.0
    %325 = vmatprep.subr.mxu0 0.0
    %326 = vmatpush1.msra.mxu0 0.0
    %327 = vmatprep.subr.mxu0 0.0
    %328 = vmatpush1.msra.mxu0 0.0
    %329 = vmatprep.subr.mxu0 0.0
    %330 = vmatpush1.msra.mxu0 0.0
    %331 = vmatprep.subr.mxu0 0.0
    %332 = vmatpush1.msra.mxu0 0.0
    %333 = vmatprep.subr.mxu0 0.0
    %334 = vmatpush1.msra.mxu0 0.0
    %335 = vmatprep.subr.mxu0 0.0
    %336 = vmatpush1.msra.mxu0 0.0
    %337 = vmatprep.subr.mxu0 0.0
    %338 = vmatpush1.msra.mxu0 0.0
    %339 = vmatprep.subr.mxu0 0.0
    %340 = vmatpush1.msra.mxu0 0.0
    %341 = vmatprep.subr.mxu0 0.0
    %342 = vmatpush1.msra.mxu0 0.0
    %343 = vmatprep.subr.mxu0 0.0
    %344 = vmatpush1.msra.mxu0 0.0
    %345 = vmatprep.subr.mxu0 0.0
    %346 = vmatpush1.msra.mxu0 0.0
    %347 = vmatprep.subr.mxu0 0.0
    %348 = vmatpush1.msra.mxu0 0.0
    %349 = vmatprep.mubr.f32.mxu0 0.0
    %350 = vmatmul.mubr.f32.gmra.mrb[0].mxu0 %v283
    %v351 = vpop.f32.mrb[0].mxu0
    %v352 = vadd.f32 0.0, %v351
    %v353 = vpop.f32.mrb[0].mxu0
    %354 = vdwg.mxu0
    %v356 = vrot.slane %v352, 4
    %v358 = vadd.f32 %v139, %v356
    %v359 = vsub.f32 0.0, %v358
    %v360 = vmul.f32 %v359, 1.442695
    %v361 = vpow.pop %v360
    %v362 = vadd.f32 %v361, 1.0
    %v363 = vrcp.pop %v362
    %v364 = vmul.f32 1.0, %v363
    %v365 = vtanh.pop %v358
    %367 = vrot.lane.b32.xlu0 %v365, 64
    %v368 = vpop.permute.xlu0 %367
    %v370 = vmul.f32 %v364, %v368
    %v372 = vrot.slane %v270, 6
    %v374 = vmul.f32 %v364, %v372
    %376 = vrot.lane.b32.xlu0 %v370, 32
    %v377 = vpop.permute.xlu0 %376
    %v379 = vadd.f32 %v374, %v377
    %v380 = vtanh.pop %v379
    %382 = vrot.lane.b32.xlu0 %v380, 64
    %v383 = vpop.permute.xlu0 %382
    %v385 = vmul.f32 %v364, %v383
    %v387 = vrot.slane %v385, 4
    %v389 = vmax.f32 %v280, %v387
    %390 = vrot.lane.b32.xlu0 %v387, 32
    %v391 = vpop.permute.xlu0 %390
    %v392 = vsel %vm65, %v391, 0
    %394 = vmatprep.subr.mxu0 0.0
    %395 = vmatpush1.msra.mxu0 %v147
    %396 = vmatprep.subr.mxu0 0.0
    %397 = vmatpush1.msra.mxu0 %v148
    %398 = vmatprep.subr.mxu0 0.0
    %399 = vmatpush1.msra.mxu0 %v149
    %400 = vmatprep.subr.mxu0 0.0
    %401 = vmatpush1.msra.mxu0 %v150
    %402 = vmatprep.subr.mxu0 0.0
    %403 = vmatpush1.msra.mxu0 0.0
    %404 = vmatprep.subr.mxu0 0.0
    %405 = vmatpush1.msra.mxu0 0.0
    %406 = vmatprep.subr.mxu0 0.0
    %407 = vmatpush1.msra.mxu0 0.0
    %408 = vmatprep.subr.mxu0 0.0
    %409 = vmatpush1.msra.mxu0 0.0
    %410 = vmatprep.subr.mxu0 0.0
    %411 = vmatpush1.msra.mxu0 0.0
    %412 = vmatprep.subr.mxu0 0.0
    %413 = vmatpush1.msra.mxu0 0.0
    %414 = vmatprep.subr.mxu0 0.0
    %415 = vmatpush1.msra.mxu0 0.0
    %416 = vmatprep.subr.mxu0 0.0
    %417 = vmatpush1.msra.mxu0 0.0
    %418 = vmatprep.subr.mxu0 0.0
    %419 = vmatpush1.msra.mxu0 0.0
    %420 = vmatprep.subr.mxu0 0.0
    %421 = vmatpush1.msra.mxu0 0.0
    %422 = vmatprep.subr.mxu0 0.0
    %423 = vmatpush1.msra.mxu0 0.0
    %424 = vmatprep.subr.mxu0 0.0
    %425 = vmatpush1.msra.mxu0 0.0
    %426 = vmatprep.subr.mxu0 0.0
    %427 = vmatpush1.msra.mxu0 0.0
    %428 = vmatprep.subr.mxu0 0.0
    %429 = vmatpush1.msra.mxu0 0.0
    %430 = vmatprep.subr.mxu0 0.0
    %431 = vmatpush1.msra.mxu0 0.0
    %432 = vmatprep.subr.mxu0 0.0
    %433 = vmatpush1.msra.mxu0 0.0
    %434 = vmatprep.subr.mxu0 0.0
    %435 = vmatpush1.msra.mxu0 0.0
    %436 = vmatprep.subr.mxu0 0.0
    %437 = vmatpush1.msra.mxu0 0.0
    %438 = vmatprep.subr.mxu0 0.0
    %439 = vmatpush1.msra.mxu0 0.0
    %440 = vmatprep.subr.mxu0 0.0
    %441 = vmatpush1.msra.mxu0 0.0
    %442 = vmatprep.subr.mxu0 0.0
    %443 = vmatpush1.msra.mxu0 0.0
    %444 = vmatprep.subr.mxu0 0.0
    %445 = vmatpush1.msra.mxu0 0.0
    %446 = vmatprep.subr.mxu0 0.0
    %447 = vmatpush1.msra.mxu0 0.0
    %448 = vmatprep.subr.mxu0 0.0
    %449 = vmatpush1.msra.mxu0 0.0
    %450 = vmatprep.subr.mxu0 0.0
    %451 = vmatpush1.msra.mxu0 0.0
    %452 = vmatprep.subr.mxu0 0.0
    %453 = vmatpush1.msra.mxu0 0.0
    %454 = vmatprep.subr.mxu0 0.0
    %455 = vmatpush1.msra.mxu0 0.0
    %456 = vmatprep.subr.mxu0 0.0
    %457 = vmatpush1.msra.mxu0 0.0
    %458 = vmatprep.mubr.f32.mxu0 0.0
    %459 = vmatmul.mubr.f32.gmra.mrb[0].mxu0 %v392
    %v460 = vpop.f32.mrb[0].mxu0
    %v461 = vadd.f32 0.0, %v460
    %v462 = vpop.f32.mrb[0].mxu0
    %463 = vdwg.mxu0
    %v465 = vrot.slane %v461, 2
    %v467 = vadd.f32 %v139, %v465
    %v468 = vsub.f32 0.0, %v467
    %v469 = vmul.f32 %v468, 1.442695
    %v470 = vpow.pop %v469
    %v471 = vadd.f32 %v470, 1.0
    %v472 = vrcp.pop %v471
    %v473 = vmul.f32 1.0, %v472
    %v474 = vtanh.pop %v467
    %476 = vrot.lane.b32.xlu0 %v474, 64
    %v477 = vpop.permute.xlu0 %476
    %v479 = vmul.f32 %v473, %v477
    %v481 = vrot.slane %v379, 6
    %v483 = vmul.f32 %v473, %v481
    %485 = vrot.lane.b32.xlu0 %v479, 32
    %v486 = vpop.permute.xlu0 %485
    %v488 = vadd.f32 %v483, %v486
    %v489 = vtanh.pop %v488
    %491 = vrot.lane.b32.xlu0 %v489, 64
    %v492 = vpop.permute.xlu0 %491
    %v494 = vmul.f32 %v473, %v492
    %v496 = vrot.slane %v494, 6
    %v498 = vmax.f32 %v389, %v496
    %499 = vrot.lane.b32.xlu0 %v496, 32
    %v500 = vpop.permute.xlu0 %499
    %v501 = vsel %vm65, %v500, 0
    %503 = vmatprep.subr.mxu0 0.0
    %504 = vmatpush1.msra.mxu0 %v147
    %505 = vmatprep.subr.mxu0 0.0
    %506 = vmatpush1.msra.mxu0 %v148
    %507 = vmatprep.subr.mxu0 0.0
    %508 = vmatpush1.msra.mxu0 %v149
    %509 = vmatprep.subr.mxu0 0.0
    %510 = vmatpush1.msra.mxu0 %v150
    %511 = vmatprep.subr.mxu0 0.0
    %512 = vmatpush1.msra.mxu0 0.0
    %513 = vmatprep.subr.mxu0 0.0
    %514 = vmatpush1.msra.mxu0 0.0
    %515 = vmatprep.subr.mxu0 0.0
    %516 = vmatpush1.msra.mxu0 0.0
    %517 = vmatprep.subr.mxu0 0.0
    %518 = vmatpush1.msra.mxu0 0.0
    %519 = vmatprep.subr.mxu0 0.0
    %520 = vmatpush1.msra.mxu0 0.0
    %521 = vmatprep.subr.mxu0 0.0
    %522 = vmatpush1.msra.mxu0 0.0
    %523 = vmatprep.subr.mxu0 0.0
    %524 = vmatpush1.msra.mxu0 0.0
    %525 = vmatprep.subr.mxu0 0.0
    %526 = vmatpush1.msra.mxu0 0.0
    %527 = vmatprep.subr.mxu0 0.0
    %528 = vmatpush1.msra.mxu0 0.0
    %529 = vmatprep.subr.mxu0 0.0
    %530 = vmatpush1.msra.mxu0 0.0
    %531 = vmatprep.subr.mxu0 0.0
    %532 = vmatpush1.msra.mxu0 0.0
    %533 = vmatprep.subr.mxu0 0.0
    %534 = vmatpush1.msra.mxu0 0.0
    %535 = vmatprep.subr.mxu0 0.0
    %536 = vmatpush1.msra.mxu0 0.0
    %537 = vmatprep.subr.mxu0 0.0
    %538 = vmatpush1.msra.mxu0 0.0
    %539 = vmatprep.subr.mxu0 0.0
    %540 = vmatpush1.msra.mxu0 0.0
    %541 = vmatprep.subr.mxu0 0.0
    %542 = vmatpush1.msra.mxu0 0.0
    %543 = vmatprep.subr.mxu0 0.0
    %544 = vmatpush1.msra.mxu0 0.0
    %545 = vmatprep.subr.mxu0 0.0
    %546 = vmatpush1.msra.mxu0 0.0
    %547 = vmatprep.subr.mxu0 0.0
    %548 = vmatpush1.msra.mxu0 0.0
    %549 = vmatprep.subr.mxu0 0.0
    %550 = vmatpush1.msra.mxu0 0.0
    %551 = vmatprep.subr.mxu0 0.0
    %552 = vmatpush1.msra.mxu0 0.0
    %553 = vmatprep.subr.mxu0 0.0
    %554 = vmatpush1.msra.mxu0 0.0
    %555 = vmatprep.subr.mxu0 0.0
    %556 = vmatpush1.msra.mxu0 0.0
    %557 = vmatprep.subr.mxu0 0.0
    %558 = vmatpush1.msra.mxu0 0.0
    %559 = vmatprep.subr.mxu0 0.0
    %560 = vmatpush1.msra.mxu0 0.0
    %561 = vmatprep.subr.mxu0 0.0
    %562 = vmatpush1.msra.mxu0 0.0
    %563 = vmatprep.subr.mxu0 0.0
    %564 = vmatpush1.msra.mxu0 0.0
    %565 = vmatprep.subr.mxu0 0.0
    %566 = vmatpush1.msra.mxu0 0.0
    %567 = vmatprep.mubr.f32.mxu0 0.0
    %568 = vmatmul.mubr.f32.gmra.mrb[0].mxu0 %v501
    %v569 = vpop.f32.mrb[0].mxu0
    %v570 = vadd.f32 0.0, %v569
    %v571 = vpop.f32.mrb[0].mxu0
    %572 = vdwg.mxu0
    %v573 = vadd.f32 %v144, %v570
    %v574 = vsub.f32 0.0, %v573
    %v575 = vmul.f32 %v574, 1.442695
    %v576 = vpow.pop %v575
    %v577 = vadd.f32 %v576, 1.0
    %v578 = vrcp.pop %v577
    %v579 = vmul.f32 1.0, %v578
    %v580 = vtanh.pop %v573
    %582 = vrot.lane.b32.xlu0 %v580, 64
    %v583 = vpop.permute.xlu0 %582
    %v585 = vmul.f32 %v579, %v583
    %v587 = vrot.slane %v488, 6
    %v589 = vmul.f32 %v579, %v587
    %591 = vrot.lane.b32.xlu0 %v585, 32
    %v592 = vpop.permute.xlu0 %591
    %v594 = vadd.f32 %v589, %v592
    %v595 = vtanh.pop %v594
    %597 = vrot.lane.b32.xlu0 %v595, 64
    %v598 = vpop.permute.xlu0 %597
    %v600 = vmul.f32 %v579, %v598
    %v601 = vmax.f32 %v498, %v600
    %603 = vrot.lane.b32.xlu0 %v600, 32
    %v604 = vpop.permute.xlu0 %603
    %v605 = vsel %vm65, %v604, 0
    %607 = vmatprep.subr.mxu0 0.0
    %608 = vmatpush1.msra.mxu0 %v147
    %609 = vmatprep.subr.mxu0 0.0
    %610 = vmatpush1.msra.mxu0 %v148
    %611 = vmatprep.subr.mxu0 0.0
    %612 = vmatpush1.msra.mxu0 %v149
    %613 = vmatprep.subr.mxu0 0.0
    %614 = vmatpush1.msra.mxu0 %v150
    %615 = vmatprep.subr.mxu0 0.0
    %616 = vmatpush1.msra.mxu0 0.0
    %617 = vmatprep.subr.mxu0 0.0
    %618 = vmatpush1.msra.mxu0 0.0
    %619 = vmatprep.subr.mxu0 0.0
    %620 = vmatpush1.msra.mxu0 0.0
    %621 = vmatprep.subr.mxu0 0.0
    %622 = vmatpush1.msra.mxu0 0.0
    %623 = vmatprep.subr.mxu0 0.0
    %624 = vmatpush1.msra.mxu0 0.0
    %625 = vmatprep.subr.mxu0 0.0
    %626 = vmatpush1.msra.mxu0 0.0
    %627 = vmatprep.subr.mxu0 0.0
    %628 = vmatpush1.msra.mxu0 0.0
    %629 = vmatprep.subr.mxu0 0.0
    %630 = vmatpush1.msra.mxu0 0.0
    %631 = vmatprep.subr.mxu0 0.0
    %632 = vmatpush1.msra.mxu0 0.0
    %633 = vmatprep.subr.mxu0 0.0
    %634 = vmatpush1.msra.mxu0 0.0
    %635 = vmatprep.subr.mxu0 0.0
    %636 = vmatpush1.msra.mxu0 0.0
    %637 = vmatprep.subr.mxu0 0.0
    %638 = vmatpush1.msra.mxu0 0.0
    %639 = vmatprep.subr.mxu0 0.0
    %640 = vmatpush1.msra.mxu0 0.0
    %641 = vmatprep.subr.mxu0 0.0
    %642 = vmatpush1.msra.mxu0 0.0
    %643 = vmatprep.subr.mxu0 0.0
    %644 = vmatpush1.msra.mxu0 0.0
    %645 = vmatprep.subr.mxu0 0.0
    %646 = vmatpush1.msra.mxu0 0.0
    %647 = vmatprep.subr.mxu0 0.0
    %648 = vmatpush1.msra.mxu0 0.0
    %649 = vmatprep.subr.mxu0 0.0
    %650 = vmatpush1.msra.mxu0 0.0
    %651 = vmatprep.subr.mxu0 0.0
    %652 = vmatpush1.msra.mxu0 0.0
    %653 = vmatprep.subr.mxu0 0.0
    %654 = vmatpush1.msra.mxu0 0.0
    %655 = vmatprep.subr.mxu0 0.0
    %656 = vmatpush1.msra.mxu0 0.0
    %657 = vmatprep.subr.mxu0 0.0
    %658 = vmatpush1.msra.mxu0 0.0
    %659 = vmatprep.subr.mxu0 0.0
    %660 = vmatpush1.msra.mxu0 0.0
    %661 = vmatprep.subr.mxu0 0.0
    %662 = vmatpush1.msra.mxu0 0.0
    %663 = vmatprep.subr.mxu0 0.0
    %664 = vmatpush1.msra.mxu0 0.0
    %665 = vmatprep.subr.mxu0 0.0
    %666 = vmatpush1.msra.mxu0 0.0
    %667 = vmatprep.subr.mxu0 0.0
    %668 = vmatpush1.msra.mxu0 0.0
    %669 = vmatprep.subr.mxu0 0.0
    %670 = vmatpush1.msra.mxu0 0.0
    %671 = vmatprep.mubr.f32.mxu0 0.0
    %672 = vmatmul.mubr.f32.gmra.mrb[0].mxu0 %v605
    %v673 = vpop.f32.mrb[0].mxu0
    %v674 = vadd.f32 0.0, %v673
    %v675 = vpop.f32.mrb[0].mxu0
    %676 = vdwg.mxu0
    %v678 = vrot.slane %v674, 6
    %v680 = vadd.f32 %v144, %v678
    %v681 = vsub.f32 0.0, %v680
    %v682 = vmul.f32 %v681, 1.442695
    %v683 = vpow.pop %v682
    %v684 = vadd.f32 %v683, 1.0
    %v685 = vrcp.pop %v684
    %v686 = vmul.f32 1.0, %v685
    %v687 = vtanh.pop %v680
    %689 = vrot.lane.b32.xlu0 %v687, 64
    %v690 = vpop.permute.xlu0 %689
    %v692 = vmul.f32 %v686, %v690
    %v694 = vrot.slane %v594, 6
    %v696 = vmul.f32 %v686, %v694
    %698 = vrot.lane.b32.xlu0 %v692, 32
    %v699 = vpop.permute.xlu0 %698
    %v701 = vadd.f32 %v696, %v699
    %v702 = vtanh.pop %v701
    %704 = vrot.lane.b32.xlu0 %v702, 64
    %v705 = vpop.permute.xlu0 %704
    %v707 = vmul.f32 %v686, %v705
    %v709 = vrot.slane %v707, 2
    %v711 = vmax.f32 %v601, %v709
    %712 = vrot.lane.b32.xlu0 %v709, 32
    %v713 = vpop.permute.xlu0 %712
    %v714 = vsel %vm65, %v713, 0
    %716 = vmatprep.subr.mxu0 0.0
    %717 = vmatpush1.msra.mxu0 %v147
    %718 = vmatprep.subr.mxu0 0.0
    %719 = vmatpush1.msra.mxu0 %v148
    %720 = vmatprep.subr.mxu0 0.0
    %721 = vmatpush1.msra.mxu0 %v149
    %722 = vmatprep.subr.mxu0 0.0
    %723 = vmatpush1.msra.mxu0 %v150
    %724 = vmatprep.subr.mxu0 0.0
    %725 = vmatpush1.msra.mxu0 0.0
    %726 = vmatprep.subr.mxu0 0.0
    %727 = vmatpush1.msra.mxu0 0.0
    %728 = vmatprep.subr.mxu0 0.0
    %729 = vmatpush1.msra.mxu0 0.0
    %730 = vmatprep.subr.mxu0 0.0
    %731 = vmatpush1.msra.mxu0 0.0
    %732 = vmatprep.subr.mxu0 0.0
    %733 = vmatpush1.msra.mxu0 0.0
    %734 = vmatprep.subr.mxu0 0.0
    %735 = vmatpush1.msra.mxu0 0.0
    %736 = vmatprep.subr.mxu0 0.0
    %737 = vmatpush1.msra.mxu0 0.0
    %738 = vmatprep.subr.mxu0 0.0
    %739 = vmatpush1.msra.mxu0 0.0
    %740 = vmatprep.subr.mxu0 0.0
    %741 = vmatpush1.msra.mxu0 0.0
    %742 = vmatprep.subr.mxu0 0.0
    %743 = vmatpush1.msra.mxu0 0.0
    %744 = vmatprep.subr.mxu0 0.0
    %745 = vmatpush1.msra.mxu0 0.0
    %746 = vmatprep.subr.mxu0 0.0
    %747 = vmatpush1.msra.mxu0 0.0
    %748 = vmatprep.subr.mxu0 0.0
    %749 = vmatpush1.msra.mxu0 0.0
    %750 = vmatprep.subr.mxu0 0.0
    %751 = vmatpush1.msra.mxu0 0.0
    %752 = vmatprep.subr.mxu0 0.0
    %753 = vmatpush1.msra.mxu0 0.0
    %754 = vmatprep.subr.mxu0 0.0
    %755 = vmatpush1.msra.mxu0 0.0
    %756 = vmatprep.subr.mxu0 0.0
    %757 = vmatpush1.msra.mxu0 0.0
    %758 = vmatprep.subr.mxu0 0.0
    %759 = vmatpush1.msra.mxu0 0.0
    %760 = vmatprep.subr.mxu0 0.0
    %761 = vmatpush1.msra.mxu0 0.0
    %762 = vmatprep.subr.mxu0 0.0
    %763 = vmatpush1.msra.mxu0 0.0
    %764 = vmatprep.subr.mxu0 0.0
    %765 = vmatpush1.msra.mxu0 0.0
    %766 = vmatprep.subr.mxu0 0.0
    %767 = vmatpush1.msra.mxu0 0.0
    %768 = vmatprep.subr.mxu0 0.0
    %769 = vmatpush1.msra.mxu0 0.0
    %770 = vmatprep.subr.mxu0 0.0
    %771 = vmatpush1.msra.mxu0 0.0
    %772 = vmatprep.subr.mxu0 0.0
    %773 = vmatpush1.msra.mxu0 0.0
    %774 = vmatprep.subr.mxu0 0.0
    %775 = vmatpush1.msra.mxu0 0.0
    %776 = vmatprep.subr.mxu0 0.0
    %777 = vmatpush1.msra.mxu0 0.0
    %778 = vmatprep.subr.mxu0 0.0
    %779 = vmatpush1.msra.mxu0 0.0
    %780 = vmatprep.mubr.f32.mxu0 0.0
    %781 = vmatmul.mubr.f32.gmra.mrb[0].mxu0 %v714
    %v782 = vpop.f32.mrb[0].mxu0
    %v783 = vadd.f32 0.0, %v782
    %v784 = vpop.f32.mrb[0].mxu0
    %785 = vdwg.mxu0
    %v787 = vrot.slane %v783, 4
    %v789 = vadd.f32 %v144, %v787
    %v790 = vsub.f32 0.0, %v789
    %v791 = vmul.f32 %v790, 1.442695
    %v792 = vpow.pop %v791
    %v793 = vadd.f32 %v792, 1.0
    %v794 = vrcp.pop %v793
    %v795 = vmul.f32 1.0, %v794
    %v796 = vtanh.pop %v789
    %798 = vrot.lane.b32.xlu0 %v796, 64
    %v799 = vpop.permute.xlu0 %798
    %v801 = vmul.f32 %v795, %v799
    %v803 = vrot.slane %v701, 6
    %v805 = vmul.f32 %v795, %v803
    %807 = vrot.lane.b32.xlu0 %v801, 32
    %v808 = vpop.permute.xlu0 %807
    %v810 = vadd.f32 %v805, %v808
    %v811 = vtanh.pop %v810
    %813 = vrot.lane.b32.xlu0 %v811, 64
    %v814 = vpop.permute.xlu0 %813
    %v816 = vmul.f32 %v795, %v814
    %v818 = vrot.slane %v816, 4
    %v820 = vmax.f32 %v711, %v818
    %821 = vrot.lane.b32.xlu0 %v818, 32
    %v822 = vpop.permute.xlu0 %821
    %v823 = vsel %vm65, %v822, 0
    %825 = vmatprep.subr.mxu0 0.0
    %826 = vmatpush1.msra.mxu0 %v147
    %827 = vmatprep.subr.mxu0 0.0
    %828 = vmatpush1.msra.mxu0 %v148
    %829 = vmatprep.subr.mxu0 0.0
    %830 = vmatpush1.msra.mxu0 %v149
    %831 = vmatprep.subr.mxu0 0.0
    %832 = vmatpush1.msra.mxu0 %v150
    %833 = vmatprep.subr.mxu0 0.0
    %834 = vmatpush1.msra.mxu0 0.0
    %835 = vmatprep.subr.mxu0 0.0
    %836 = vmatpush1.msra.mxu0 0.0
    %837 = vmatprep.subr.mxu0 0.0
    %838 = vmatpush1.msra.mxu0 0.0
    %839 = vmatprep.subr.mxu0 0.0
    %840 = vmatpush1.msra.mxu0 0.0
    %841 = vmatprep.subr.mxu0 0.0
    %842 = vmatpush1.msra.mxu0 0.0
    %843 = vmatprep.subr.mxu0 0.0
    %844 = vmatpush1.msra.mxu0 0.0
    %845 = vmatprep.subr.mxu0 0.0
    %846 = vmatpush1.msra.mxu0 0.0
    %847 = vmatprep.subr.mxu0 0.0
    %848 = vmatpush1.msra.mxu0 0.0
    %849 = vmatprep.subr.mxu0 0.0
    %850 = vmatpush1.msra.mxu0 0.0
    %851 = vmatprep.subr.mxu0 0.0
    %852 = vmatpush1.msra.mxu0 0.0
    %853 = vmatprep.subr.mxu0 0.0
    %854 = vmatpush1.msra.mxu0 0.0
    %855 = vmatprep.subr.mxu0 0.0
    %856 = vmatpush1.msra.mxu0 0.0
    %857 = vmatprep.subr.mxu0 0.0
    %858 = vmatpush1.msra.mxu0 0.0
    %859 = vmatprep.subr.mxu0 0.0
    %860 = vmatpush1.msra.mxu0 0.0
    %861 = vmatprep.subr.mxu0 0.0
    %862 = vmatpush1.msra.mxu0 0.0
    %863 = vmatprep.subr.mxu0 0.0
    %864 = vmatpush1.msra.mxu0 0.0
    %865 = vmatprep.subr.mxu0 0.0
    %866 = vmatpush1.msra.mxu0 0.0
    %867 = vmatprep.subr.mxu0 0.0
    %868 = vmatpush1.msra.mxu0 0.0
    %869 = vmatprep.subr.mxu0 0.0
    %870 = vmatpush1.msra.mxu0 0.0
    %871 = vmatprep.subr.mxu0 0.0
    %872 = vmatpush1.msra.mxu0 0.0
    %873 = vmatprep.subr.mxu0 0.0
    %874 = vmatpush1.msra.mxu0 0.0
    %875 = vmatprep.subr.mxu0 0.0
    %876 = vmatpush1.msra.mxu0 0.0
    %877 = vmatprep.subr.mxu0 0.0
    %878 = vmatpush1.msra.mxu0 0.0
    %879 = vmatprep.subr.mxu0 0.0
    %880 = vmatpush1.msra.mxu0 0.0
    %881 = vmatprep.subr.mxu0 0.0
    %882 = vmatpush1.msra.mxu0 0.0
    %883 = vmatprep.subr.mxu0 0.0
    %884 = vmatpush1.msra.mxu0 0.0
    %885 = vmatprep.subr.mxu0 0.0
    %886 = vmatpush1.msra.mxu0 0.0
    %887 = vmatprep.subr.mxu0 0.0
    %888 = vmatpush1.msra.mxu0 0.0
    %889 = vmatprep.mubr.f32.mxu0 0.0
    %890 = vmatmul.mubr.f32.gmra.mrb[0].mxu0 %v823
    %v891 = vpop.f32.mrb[0].mxu0
    %v892 = vadd.f32 0.0, %v891
    %v893 = vpop.f32.mrb[0].mxu0
    %894 = vdwg.mxu0
    %v896 = vrot.slane %v892, 2
    %v898 = vadd.f32 %v144, %v896
    %v899 = vsub.f32 0.0, %v898
    %v900 = vmul.f32 %v899, 1.442695
    %v901 = vpow.pop %v900
    %v902 = vadd.f32 %v901, 1.0
    %v903 = vrcp.pop %v902
    %v904 = vmul.f32 1.0, %v903
    %v905 = vtanh.pop %v898
    %907 = vrot.lane.b32.xlu0 %v905, 64
    %v908 = vpop.permute.xlu0 %907
    %v910 = vmul.f32 %v904, %v908
    %v912 = vrot.slane %v810, 6
    %v914 = vmul.f32 %v904, %v912
    %916 = vrot.lane.b32.xlu0 %v910, 32
    %v917 = vpop.permute.xlu0 %916
    %v919 = vadd.f32 %v914, %v917
    %v920 = vtanh.pop %v919
    %922 = vrot.lane.b32.xlu0 %v920, 64
    %v923 = vpop.permute.xlu0 %922
    %v925 = vmul.f32 %v904, %v923
    %v927 = vrot.slane %v925, 6
    %v929 = vmax.f32 %v820, %v927
    %v930 = vld [vmem:[%s4] sm:$0xff]
    %v931 = vld [vmem:[%s4 + $0x8] sm:$0xff]
    %v932 = vld [vmem:[%s4 + $0x10] sm:$0xff]
    %v933 = vld [vmem:[%s4 + $0x18] sm:$0xff]
    %v934 = vld [vmem:[%s5] sm:$0x1]
    %v936 = vlaneseq
    %v937 = vshrl.u32 %v936, 7
    %v938 = vsub.s32 0, %v937
    %v939 = vrot.slane %v934, %v938
    %942 = vrot.lane.b32.xlu0 %v929, 32
    %v943 = vpop.permute.xlu0 %942
    %v944 = vsel %vm65, %v943, 0
    %946 = vmatprep.subr.mxu0 0.0
    %947 = vmatpush1.msra.mxu0 %v930
    %948 = vmatprep.subr.mxu0 0.0
    %949 = vmatpush1.msra.mxu0 %v931
    %950 = vmatprep.subr.mxu0 0.0
    %951 = vmatpush1.msra.mxu0 %v932
    %952 = vmatprep.subr.mxu0 0.0
    %953 = vmatpush1.msra.mxu0 %v933
    %954 = vmatprep.subr.mxu0 0.0
    %955 = vmatpush1.msra.mxu0 0.0
    %956 = vmatprep.subr.mxu0 0.0
    %957 = vmatpush1.msra.mxu0 0.0
    %958 = vmatprep.subr.mxu0 0.0
    %959 = vmatpush1.msra.mxu0 0.0
    %960 = vmatprep.subr.mxu0 0.0
    %961 = vmatpush1.msra.mxu0 0.0
    %962 = vmatprep.subr.mxu0 0.0
    %963 = vmatpush1.msra.mxu0 0.0
    %964 = vmatprep.subr.mxu0 0.0
    %965 = vmatpush1.msra.mxu0 0.0
    %966 = vmatprep.subr.mxu0 0.0
    %967 = vmatpush1.msra.mxu0 0.0
    %968 = vmatprep.subr.mxu0 0.0
    %969 = vmatpush1.msra.mxu0 0.0
    %970 = vmatprep.subr.mxu0 0.0
    %971 = vmatpush1.msra.mxu0 0.0
    %972 = vmatprep.subr.mxu0 0.0
    %973 = vmatpush1.msra.mxu0 0.0
    %974 = vmatprep.subr.mxu0 0.0
    %975 = vmatpush1.msra.mxu0 0.0
    %976 = vmatprep.subr.mxu0 0.0
    %977 = vmatpush1.msra.mxu0 0.0
    %978 = vmatprep.subr.mxu0 0.0
    %979 = vmatpush1.msra.mxu0 0.0
    %980 = vmatprep.subr.mxu0 0.0
    %981 = vmatpush1.msra.mxu0 0.0
    %982 = vmatprep.subr.mxu0 0.0
    %983 = vmatpush1.msra.mxu0 0.0
    %984 = vmatprep.subr.mxu0 0.0
    %985 = vmatpush1.msra.mxu0 0.0
    %986 = vmatprep.subr.mxu0 0.0
    %987 = vmatpush1.msra.mxu0 0.0
    %988 = vmatprep.subr.mxu0 0.0
    %989 = vmatpush1.msra.mxu0 0.0
    %990 = vmatprep.subr.mxu0 0.0
    %991 = vmatpush1.msra.mxu0 0.0
    %992 = vmatprep.subr.mxu0 0.0
    %993 = vmatpush1.msra.mxu0 0.0
    %994 = vmatprep.subr.mxu0 0.0
    %995 = vmatpush1.msra.mxu0 0.0
    %996 = vmatprep.subr.mxu0 0.0
    %997 = vmatpush1.msra.mxu0 0.0
    %998 = vmatprep.subr.mxu0 0.0
    %999 = vmatpush1.msra.mxu0 0.0
    %1000 = vmatprep.subr.mxu0 0.0
    %1001 = vmatpush1.msra.mxu0 0.0
    %1002 = vmatprep.subr.mxu0 0.0
    %1003 = vmatpush1.msra.mxu0 0.0
    %1004 = vmatprep.subr.mxu0 0.0
    %1005 = vmatpush1.msra.mxu0 0.0
    %1006 = vmatprep.subr.mxu0 0.0
    %1007 = vmatpush1.msra.mxu0 0.0
    %1008 = vmatprep.subr.mxu0 0.0
    %1009 = vmatpush1.msra.mxu0 0.0
    %1010 = vmatprep.mubr.f32.mxu0 0.0
    %1011 = vmatmul.mubr.f32.gmra.mrb[0].mxu0 %v944
    %v1012 = vpop.f32.mrb[0].mxu0
    %v1013 = vadd.f32 %v939, %v1012
    %v1014 = vpop.f32.mrb[0].mxu0
    %1015 = vdwg.mxu0
    %vm1016 = vcmask 25600
    %1017 = vst.msk [vmem:[#allocation7] sm:$0x3] %vm1016, %v1013
    // Predicated region
    $region34: #{tpu_custom_call.1} parent=1 // pred_check
      _
    $region35: #{tpu_custom_call.1} parent=1 // pred_check_branch
      %1019 = sbr.rel (0) target = $region37
    $region36: #{tpu_custom_call.1} parent=1 // pred_region
      %s1021 = ssub.s32 32, 32
      %1022 = vsyncadd [#allocation4], %s1021
      %s1024 = sshll.u32 [#allocation7], 4
      %s1025 = int_to_ptr.vmem [resolvable:$true] %s1024
      %1027 = dma.vmem_to_hbm [thread:$0]  %s1025, 32, %s6, [#allocation4]
    $region37: #{tpu_custom_call.1} parent=1 // pred_fallthru
      _
    // Predicated region
    $region38: #{tpu_custom_call.1} parent=1 // pred_check
      _
    $region39: #{tpu_custom_call.1} parent=1 // pred_check_branch
      %1029 = sbr.rel (0) target = $region41
    $region40: #{tpu_custom_call.1} parent=1 // pred_region
      %1030 = dma.done [#allocation4], 32
    $region41: #{tpu_custom_call.1} parent=1 // pred_fallthru
      _
    %1031 = vsyncpa [#allocation3], 1
    %1032 = vsyncpa [#allocation6], 1
    %1033 = vsyncpa [#allocation4], 1

</llo_original>
